<compile_context>
chip_gen: v7x
topology: tpu7x:2x2x1
jax: 0.10.0
libtpu: 0.0.40
codegen_flags: <defaults>
</compile_context>

<pallas_src>
import jax
import jax.numpy as jnp
from jax.experimental import pallas as pl
from jax.experimental.pallas import tpu as pltpu


def _copy_kernel(x_ref, o_ref):
    # Identity copy of the current lane-dense tile.
    o_ref[...] = x_ref[...]


def _sublane_multiple(dtype):
    """Native sublane packing tile: 8 for 4-byte, 16 for 2-byte, 32 for 1-byte."""
    return max(8, 32 // jnp.dtype(dtype).itemsize)


def _lane_dense_copy_shape(total, sublane_mult):
    """Pick (rows, cols): cols a multiple of 128, rows kept >= the sublane tile.

    Caller guarantees total % 128 == 0.
    """
    cols = 128
    # Widen the lane dimension (wide unmasked vst) while the row count stays
    # at least one full sublane tile, so vregs remain densely packed.
    while (cols * 2 <= 2048
           and total % (cols * 2) == 0
           and (total // (cols * 2)) >= sublane_mult):
        cols *= 2
    return total // cols, cols


def _target_block_bytes():
    """Generation-aware block target: smaller on v7x (64 MiB VMEM), larger on v5e/v6e."""
    try:
        vmem = pltpu.get_tpu_info().vmem_capacity_bytes
    except Exception:
        vmem = 64 << 20  # assume the smallest (v7x) if the query is unavailable
    return (8 << 20) if vmem <= (64 << 20) else (12 << 20)


# Below this the kernel is essentially pure launch/pipeline overhead; use the
# metadata-only reshape instead.
_SMALL_BYTES_THRESHOLD = 1 << 20


def squeeze(x, out_size, *, force_kernel=False):
    """Equivalent of torch `x.view(-1, out_size)`.

    Defaults to a zero-cost metadata reshape (the op is pure metadata); runs a
    roofline-oriented Pallas streaming copy only for large, lane-aligned
    tensors or when `force_kernel=True`.
    """
    total = x.size
    assert total % out_size == 0, "total elements must be divisible by out_size"
    rows = total // out_size

    itemsize = jnp.dtype(x.dtype).itemsize
    total_bytes = total * itemsize

    # Non-lane-aligned totals: metadata reshape only.  (Avoids the old
    # single-whole-array-block fallback that could exceed VMEM and would use
    # masked partial stores.)
    if total % 128 != 0:
        return jnp.reshape(x, (rows, out_size))

    # Small tensors: the kernel would be ~100% overhead -- skip it.
    if not force_kernel and total_bytes < _SMALL_BYTES_THRESHOLD:
        return jnp.reshape(x, (rows, out_size))

    sub = _sublane_multiple(x.dtype)
    copy_rows, copy_cols = _lane_dense_copy_shape(total, sub)

    # Metadata-only reshape (row-major, matches torch .view element order) to
    # the lane-dense copy layout.
    x2d = jnp.reshape(x, (copy_rows, copy_cols))

    # Row tile targeting the per-generation block size, rounded down to a
    # multiple of the dtype's sublane tile (keeps loads/stores full-width).
    row_bytes = copy_cols * itemsize
    block_rows = (_target_block_bytes() // row_bytes) // sub * sub
    block_rows = max(sub, block_rows)
    block_rows = min(block_rows, copy_rows)  # small arrays: one full-extent block

    block_bytes = block_rows * copy_cols * itemsize
    # 2 arrays (in + out) x double buffering = 4 live blocks, plus margin for
    # internal scratch.  Cap well under v7x's 64 MiB physical VMEM.
    vmem_limit = min(4 * block_bytes + (4 << 20), 56 << 20)

    grid = (pl.cdiv(copy_rows, block_rows),)

    out2d = pl.pallas_call(
        _copy_kernel,
        out_shape=jax.ShapeDtypeStruct((copy_rows, copy_cols), x.dtype),
        grid_spec=pltpu.PrefetchScalarGridSpec(
            num_scalar_prefetch=0,
            grid=grid,
            in_specs=[pl.BlockSpec((block_rows, copy_cols), lambda i: (i, 0))],
            out_specs=pl.BlockSpec((block_rows, copy_cols), lambda i: (i, 0)),
        ),
        compiler_params=pltpu.CompilerParams(
            dimension_semantics=("parallel",),  # shards grid across TCs on v7x
            vmem_limit_bytes=vmem_limit,
        ),
    )(x2d)

    # Final metadata reshape to the PyTorch view target shape (zero-cost).
    return jnp.reshape(out2d, (rows, out_size))


if __name__ == "__main__":
    key = jax.random.PRNGKey(0)
    # Small NCHW input consistent with a conv-style feature map.
    x = jax.random.normal(key, (2, 4, 16, 16), dtype=jnp.float32)
    out_size = 32  # 2*4*16*16 = 2048 -> output shape (64, 32)

    # Reference: plain row-major reshape == torch .view semantics.
    ref = jax.block_until_ready(jnp.reshape(x, (-1, out_size)))

    # Force the Pallas data-path kernel (the small example would otherwise take
    # the pure-metadata fast path).
    y = jax.block_until_ready(squeeze(x, out_size, force_kernel=True))
    assert y.shape == ref.shape == (64, 32)
    assert jnp.array_equal(y, ref)

    # Default path (metadata-only fast path) must agree as well.
    y_fast = jax.block_until_ready(squeeze(x, out_size))
    assert y_fast.shape == (64, 32)
    assert jnp.array_equal(y_fast, ref)

    print("KERNEL_OK")
</pallas_src>

<mosaic_0001>
module attributes {stable_mosaic.version = 11 : i64} {
  func.func @_copy_kernel(%arg0: i32, %arg1: memref<8x256xf32, #tpu.memory_space<vmem>>, %arg2: memref<8x256xf32, #tpu.memory_space<vmem>>) attributes {dimension_semantics = [#tpu.dimension_semantics<parallel>], iteration_bounds = array<i64: 1>, scalar_prefetch = 0 : i64, scratch_operands = 0 : i64, tpu.core_type = #tpu.core_type<tc>, window_params = [{transform_indices = @transform_0, window_bounds = array<i64: 8, 256>}, {transform_indices = @transform_1, window_bounds = array<i64: 8, 256>}]} {
    %c0 = arith.constant 0 : index
    %c0_0 = arith.constant 0 : index
    %0 = vector.load %arg1[%c0, %c0_0] : memref<8x256xf32, #tpu.memory_space<vmem>>, vector<8x256xf32>
    %c0_1 = arith.constant 0 : index
    %c0_2 = arith.constant 0 : index
    %1 = vector.load %arg2[%c0_1, %c0_2] : memref<8x256xf32, #tpu.memory_space<vmem>>, vector<8x256xf32>
    tpu.vector_store %arg2[%c0_1, %c0_2], %0 {strides = array<i32>} : memref<8x256xf32, #tpu.memory_space<vmem>>, vector<8x256xf32>,
    return
  }
  func.func @transform_0(%arg0: i32) -> (i32, i32) {
    %c0_i32 = arith.constant 0 : i32
    %c0_i32_0 = arith.constant 0 : i32
    return %arg0, %c0_i32 : i32, i32
  }
  func.func @transform_1(%arg0: i32) -> (i32, i32) {
    %c0_i32 = arith.constant 0 : i32
    %c0_i32_0 = arith.constant 0 : i32
    return %arg0, %c0_i32 : i32, i32
  }
}

</mosaic_0001>

<llo_original>
// kernel: tpu_custom_call.1
$region0: #{tpu_custom_call.1}
  #allocation0 [shape = 'u32[]', space=smem, size = 0x4, offset = 0x4, fixed_abs, tag = 'smem constant byte address 0x4 - core index']
  #allocation1 [shape = 'u32[144,128]{1,0:T(1,128)}', space=vmem, size = 0x12000, scoped, tag = 'internal scratch']
  %s0 = inlined_call_operand.hbm [shape: f32[8,256], index: 0, kind: input, shape index: {}]
  %s1 = inlined_call_operand.hbm [shape: f32[8,256], index: 1, kind: output, shape index: {}]
  %s2 = sld [smem:[#allocation0]]
  $region18: #{tpu_custom_call.1} parent=0
    _
  %s4 = ssub.s32 1, %s2
  %s5 = scalar_select 0, %s4, %s2
  $region1: #{tpu_custom_call.1} parent=0
    #allocation2 [shape = 'u8[8192]{0}', space=vmem, size = 0x2000, scoped, tag = 'input window, operand 0, single buffered']
    #allocation3 [shape = 's32[1]{0}', space=sflag, size = 0x4, scoped, tag = 'scoped memory for tpu_custom_call.1']
    #allocation4 [shape = 's32[1]{0}', space=sflag, size = 0x4, scoped, tag = 'scoped memory for tpu_custom_call.1']
    #allocation5 [shape = 'u8[8192]{0}', space=vmem, size = 0x2000, scoped, tag = 'output window, operand 0, single buffered']
    %6 = vsyncpa [#allocation3], 0
    %7 = vsyncpa [#allocation4], 0
    // Predicated region
    $region2: #{tpu_custom_call.1} parent=1 // pred_check
      _
    $region3: #{tpu_custom_call.1} parent=1 // pred_check_branch
      %9 = sbr.rel (0) target = $region5
    $region4: #{tpu_custom_call.1} parent=1 // pred_region
      %s11 = ssub.s32 256, 256
      %12 = vsyncadd [#allocation3], %s11
      %s14 = sshll.u32 [#allocation2], 4
      %s15 = int_to_ptr.vmem [resolvable:$true] %s14
      %17 = dma.hbm_to_vmem [thread:$0]  %s0, 256, %s15, [#allocation3]
    $region5: #{tpu_custom_call.1} parent=1 // pred_fallthru
      _
    // Predicated region
    $region6: #{tpu_custom_call.1} parent=1 // pred_check
      _
    $region7: #{tpu_custom_call.1} parent=1 // pred_check_branch
      %19 = sbr.rel (0) target = $region9
    $region8: #{tpu_custom_call.1} parent=1 // pred_region
      %20 = dma.done [#allocation3], 256
    $region9: #{tpu_custom_call.1} parent=1 // pred_fallthru
      _
    %v21 = vld [vmem:[#allocation2] sm:$0xff]
    %v22 = vld [vmem:[#allocation2 + $0x8] sm:$0xff]
    %23 = vst [vmem:[#allocation5] sm:$0xff] %v21
    %24 = vst [vmem:[#allocation5 + $0x8] sm:$0xff] %v22
    // Predicated region
    $region10: #{tpu_custom_call.1} parent=1 // pred_check
      _
    $region11: #{tpu_custom_call.1} parent=1 // pred_check_branch
      %26 = sbr.rel (0) target = $region13
    $region12: #{tpu_custom_call.1} parent=1 // pred_region
      %s28 = ssub.s32 256, 256
      %29 = vsyncadd [#allocation4], %s28
      %s31 = sshll.u32 [#allocation5], 4
      %s32 = int_to_ptr.vmem [resolvable:$true] %s31
      %34 = dma.vmem_to_hbm [thread:$0]  %s32, 256, %s1, [#allocation4]
    $region13: #{tpu_custom_call.1} parent=1 // pred_fallthru
      _
    // Predicated region
    $region14: #{tpu_custom_call.1} parent=1 // pred_check
      _
    $region15: #{tpu_custom_call.1} parent=1 // pred_check_branch
      %36 = sbr.rel (0) target = $region17
    $region16: #{tpu_custom_call.1} parent=1 // pred_region
      %37 = dma.done [#allocation4], 256
    $region17: #{tpu_custom_call.1} parent=1 // pred_fallthru
      _
    %38 = vsyncpa [#allocation3], 1
    %39 = vsyncpa [#allocation4], 1

</llo_original>
